<compile_context>
chip_gen: v7x
topology: tpu7x:2x2x1
jax: 0.10.0
libtpu: 0.0.40
codegen_flags: <defaults>
</compile_context>

<pallas_src>
import functools

import jax
import jax.numpy as jnp
from jax.experimental import pallas as pl
from jax.experimental.pallas import tpu as pltpu


# ---------------------------------------------------------------------------
# helpers
# ---------------------------------------------------------------------------
def _tile(dim, target, align):
    """Largest multiple of `align` <= target that divides `dim`; else the full
    dimension (a full-extent block is always a legal TPU block size)."""
    if dim <= target:
        return dim
    t = (target // align) * align
    while t >= align:
        if dim % t == 0:
            return t
        t -= align
    # TODO(synk): pad/mask edge tiles instead of falling back to a full-dim
    # block for awkward huge dims (could exceed v7x's 64 MiB VMEM).
    return dim


@functools.lru_cache(maxsize=1)
def _mxu_tiles():
    """(tm, tn, tk) matmul tile targets: 128-wide MXU gens vs 256-wide v6e/v7x."""
    try:
        kind = jax.devices()[0].device_kind.lower()
    except Exception:
        kind = ""
    if any(v in kind for v in ("v2", "v3", "v4", "v5")):
        return 128, 128, 512
    return 256, 256, 512


def _sigmoid(x):
    return 1.0 / (1.0 + jnp.exp(-x))


def _gelu(x):
    # TODO(synk): torch F.gelu defaults to the exact erf form; tanh approx used.
    c = 0.7978845608028654  # sqrt(2/pi)
    return 0.5 * x * (1.0 + jnp.tanh(c * (x + 0.044715 * x * x * x)))


# ---------------------------------------------------------------------------
# Kernel 1: tiled linear  y = act(x @ W (+ b)) (+ residual)
#   - single-K-step path writes straight to the output (no accumulator pass)
#   - multi-K path initializes the f32 VMEM accumulator with the first dot
# ---------------------------------------------------------------------------
def _linear_kernel(x_ref, w_ref, *rest, has_bias, has_res, activation, multi_k):
    idx = 0
    b_ref = None
    r_ref = None
    if has_bias:
        b_ref = rest[idx]; idx += 1
    if has_res:
        r_ref = rest[idx]; idx += 1
    o_ref = rest[idx]; idx += 1
    acc_ref = rest[idx] if multi_k else None

    def epilogue(acc):
        y = acc
        if b_ref is not None:
            y = y + b_ref[...].astype(jnp.float32)
        if activation == "silu":
            y = y * _sigmoid(y)          # exact sigmoid, matches F.silu
        if r_ref is not None:
            y = y + r_ref[...].astype(jnp.float32)   # fused residual add
        return y.astype(o_ref.dtype)

    prod = jnp.dot(x_ref[...], w_ref[...], preferred_element_type=jnp.float32)

    if not multi_k:
        o_ref[...] = epilogue(prod)
    else:
        k = pl.program_id(2)

        @pl.when(k == 0)
        def _():
            acc_ref[...] = prod

        @pl.when(k != 0)
        def _():
            acc_ref[...] += prod

        @pl.when(k == pl.num_programs(2) - 1)
        def _():
            o_ref[...] = epilogue(acc_ref[...])


def linear(x2d, w, b=None, activation=None, residual=None):
    """x2d: (M, K), w: (K, N), b: (1, N)|None, residual: (M, N)|None -> (M, N)."""
    M, K = x2d.shape
    Kw, N = w.shape
    assert K == Kw
    tm_t, tn_t, tk_t = _mxu_tiles()
    tm = _tile(M, tm_t, 8)
    tn = _tile(N, tn_t, 128)
    tk = _tile(K, tk_t, 128)
    gk = K // tk
    multi_k = gk > 1

    if multi_k:
        grid = (M // tm, N // tn, gk)
        x_spec = pl.BlockSpec((tm, tk), lambda i, j, k: (i, k))
        w_spec = pl.BlockSpec((tk, tn), lambda i, j, k: (k, j))
        b_spec = pl.BlockSpec((1, tn), lambda i, j, k: (0, j))
        o_spec = pl.BlockSpec((tm, tn), lambda i, j, k: (i, j))
        sems = ("parallel", "parallel", "arbitrary")
        scratch = [pltpu.VMEM((tm, tn), jnp.float32)]
    else:
        grid = (M // tm, N // tn)
        x_spec = pl.BlockSpec((tm, tk), lambda i, j: (i, 0))
        w_spec = pl.BlockSpec((tk, tn), lambda i, j: (0, j))
        b_spec = pl.BlockSpec((1, tn), lambda i, j: (0, j))
        o_spec = pl.BlockSpec((tm, tn), lambda i, j: (i, j))
        sems = ("parallel", "parallel")
        scratch = []

    in_specs = [x_spec, w_spec]
    args = [x2d, w]
    if b is not None:
        in_specs.append(b_spec); args.append(b)
    if residual is not None:
        in_specs.append(o_spec); args.append(residual)

    return pl.pallas_call(
        functools.partial(_linear_kernel, has_bias=b is not None,
                          has_res=residual is not None,
                          activation=activation, multi_k=multi_k),
        out_shape=jax.ShapeDtypeStruct((M, N), x2d.dtype),
        grid=grid,
        in_specs=in_specs,
        out_specs=o_spec,
        scratch_shapes=scratch,
        compiler_params=pltpu.CompilerParams(dimension_semantics=sems),
    )(*args)


# ---------------------------------------------------------------------------
# Kernel 2: GEGLU fused into its projection matmul:
#   out = (x @ Wv + bv) * gelu(x @ Wg + bg)   -- 2F-wide tensor never hits HBM
# ---------------------------------------------------------------------------
def _geglu_linear_kernel(x_ref, wv_ref, wg_ref, bv_ref, bg_ref, o_ref, *scratch,
                         multi_k):
    pv = jnp.dot(x_ref[...], wv_ref[...], preferred_element_type=jnp.float32)
    pg = jnp.dot(x_ref[...], wg_ref[...], preferred_element_type=jnp.float32)

    def epilogue(av, ag):
        a = av + bv_ref[...].astype(jnp.float32)
        g = ag + bg_ref[...].astype(jnp.float32)
        return (a * _gelu(g)).astype(o_ref.dtype)

    if not multi_k:
        o_ref[...] = epilogue(pv, pg)
    else:
        accv_ref, accg_ref = scratch
        k = pl.program_id(2)

        @pl.when(k == 0)
        def _():
            accv_ref[...] = pv
            accg_ref[...] = pg

        @pl.when(k != 0)
        def _():
            accv_ref[...] += pv
            accg_ref[...] += pg

        @pl.when(k == pl.num_programs(2) - 1)
        def _():
            o_ref[...] = epilogue(accv_ref[...], accg_ref[...])


def geglu_linear(x2d, w_val, b_val, w_gate, b_gate):
    M, K = x2d.shape
    _, F = w_val.shape
    tm_t, tn_t, tk_t = _mxu_tiles()
    tm = _tile(M, tm_t, 8)
    tn = _tile(F, tn_t, 128)
    tk = _tile(K, tk_t, 128)
    gk = K // tk
    multi_k = gk > 1

    if multi_k:
        grid = (M // tm, F // tn, gk)
        x_spec = pl.BlockSpec((tm, tk), lambda i, j, k: (i, k))
        w_spec = pl.BlockSpec((tk, tn), lambda i, j, k: (k, j))
        b_spec = pl.BlockSpec((1, tn), lambda i, j, k: (0, j))
        o_spec = pl.BlockSpec((tm, tn), lambda i, j, k: (i, j))
        sems = ("parallel", "parallel", "arbitrary")
        scratch = [pltpu.VMEM((tm, tn), jnp.float32),
                   pltpu.VMEM((tm, tn), jnp.float32)]
    else:
        grid = (M // tm, F // tn)
        x_spec = pl.BlockSpec((tm, tk), lambda i, j: (i, 0))
        w_spec = pl.BlockSpec((tk, tn), lambda i, j: (0, j))
        b_spec = pl.BlockSpec((1, tn), lambda i, j: (0, j))
        o_spec = pl.BlockSpec((tm, tn), lambda i, j: (i, j))
        sems = ("parallel", "parallel")
        scratch = []

    return pl.pallas_call(
        functools.partial(_geglu_linear_kernel, multi_k=multi_k),
        out_shape=jax.ShapeDtypeStruct((M, F), x2d.dtype),
        grid=grid,
        in_specs=[x_spec, w_spec, w_spec, b_spec, b_spec],
        out_specs=o_spec,
        scratch_shapes=scratch,
        compiler_params=pltpu.CompilerParams(dimension_semantics=sems),
    )(x2d, w_val, w_gate, b_val, b_gate)


# ---------------------------------------------------------------------------
# Kernel 3: flash attention over (batch, head-group, q-tile, kv-tile)
# ---------------------------------------------------------------------------
def _heads_per_block(heads, dim_head):
    # Smallest head-group whose lane width is a multiple of 128 (lane-dense,
    # MXU-friendly blocks); otherwise take all heads (block == full inner dim).
    for hb in range(1, heads + 1):
        if heads % hb == 0 and (hb * dim_head) % 128 == 0:
            return hb
    return heads


def _attn_flash_kernel(q_ref, k_ref, v_ref, o_ref, m_sc, l_sc, acc_sc, *,
                       heads_blk, dim_head, scale):
    # TODO(synk): CrossAttention mask / masked_fill path not implemented.
    ki = pl.program_id(3)

    @pl.when(ki == 0)
    def _():
        m_sc[...] = jnp.full_like(m_sc, -jnp.inf)
        l_sc[...] = jnp.zeros_like(l_sc)
        acc_sc[...] = jnp.zeros_like(acc_sc)

    q = q_ref[0] * scale          # scale folded into q; stays in input dtype
    k = k_ref[0]                  # no f32 cast before the MXU (bf16-ready)
    v = v_ref[0]

    for h in range(heads_blk):    # statically unrolled; few heads per block
        sl = slice(h * dim_head, (h + 1) * dim_head)
        # q @ k^T without materializing k.T: contract the dh axes directly.
        s = jax.lax.dot_general(q[:, sl], k[:, sl], (((1,), (1,)), ((), ())),
                                preferred_element_type=jnp.float32)
        m_prev = m_sc[h]                                       # (tq, 1) f32
        m_new = jnp.maximum(m_prev, jnp.max(s, axis=-1, keepdims=True))
        alpha = jnp.exp(m_prev - m_new)
        p = jnp.exp(s - m_new)
        l_sc[h] = alpha * l_sc[h] + jnp.sum(p, axis=-1, keepdims=True)
        acc_sc[h] = alpha * acc_sc[h] + jnp.dot(
            p.astype(v.dtype), v[:, sl], preferred_element_type=jnp.float32)
        m_sc[h] = m_new

    @pl.when(ki == pl.num_programs(3) - 1)
    def _():
        outs = []
        for h in range(heads_blk):
            inv = pl.reciprocal(l_sc[h], approx=True)          # EUP, ~free
            outs.append(acc_sc[h] * inv)
        o = outs[0] if heads_blk == 1 else jnp.concatenate(outs, axis=-1)
        o_ref[0] = o.astype(o_ref.dtype)       # one lane-dense full-width store


def attention_core(q_src, k_src, v_src, heads, dim_head, scale,
                   q_goff=0, k_goff=0, v_goff=0):
    """q_src (B,Nq,*), k_src/v_src (B,Nk,*).  Group offsets index the packed
    last-dim group axis, so fused qkv / kv projections are sliced zero-copy by
    the BlockSpec index_map."""
    B, Nq = q_src.shape[0], q_src.shape[1]
    Nk = k_src.shape[1]
    inner = heads * dim_head
    hb = _heads_per_block(heads, dim_head)
    blk = hb * dim_head
    G = heads // hb
    tq = _tile(Nq, 256, 8)
    tkv = _tile(Nk, 512, 8)
    grid = (B, G, Nq // tq, Nk // tkv)

    q_spec = pl.BlockSpec((1, tq, blk), lambda b, g, qi, ki: (b, qi, q_goff + g))
    k_spec = pl.BlockSpec((1, tkv, blk), lambda b, g, qi, ki: (b, ki, k_goff + g))
    v_spec = pl.BlockSpec((1, tkv, blk), lambda b, g, qi, ki: (b, ki, v_goff + g))
    o_spec = pl.BlockSpec((1, tq, blk), lambda b, g, qi, ki: (b, qi, g))

    return pl.pallas_call(
        functools.partial(_attn_flash_kernel, heads_blk=hb, dim_head=dim_head,
                          scale=scale),
        out_shape=jax.ShapeDtypeStruct((B, Nq, inner), q_src.dtype),
        grid=grid,
        in_specs=[q_spec, k_spec, v_spec],
        out_specs=o_spec,
        scratch_shapes=[pltpu.VMEM((hb, tq, 1), jnp.float32),        # m
                        pltpu.VMEM((hb, tq, 1), jnp.float32),        # l
                        pltpu.VMEM((hb, tq, dim_head), jnp.float32)],  # acc
        compiler_params=pltpu.CompilerParams(
            dimension_semantics=("parallel", "parallel", "parallel", "arbitrary")),
    )(q_src, k_src, v_src)


# ---------------------------------------------------------------------------
# Kernel 4: modulated LayerNorm:  LN(x) * (1 + scale) + shift
#   (AdaLayerNorm uses per-batch scale/shift; the final affine LayerNorm is
#    expressed as scale = gamma - 1, shift = beta.)
# ---------------------------------------------------------------------------
def _mod_ln_kernel(x_ref, sc_ref, sh_ref, o_ref, *, eps):
    x = x_ref[0].astype(jnp.float32)                    # (tn, C)
    mu = jnp.mean(x, axis=-1, keepdims=True)
    xc = x - mu
    var = jnp.mean(xc * xc, axis=-1, keepdims=True)
    xhat = xc * jax.lax.rsqrt(var + eps)
    sc = sc_ref[0].astype(jnp.float32)                  # (1, C)
    sh = sh_ref[0].astype(jnp.float32)                  # (1, C)
    o_ref[0] = (xhat * (1.0 + sc) + sh).astype(o_ref.dtype)


def modulated_layernorm(x, scale, shift, eps=1e-5):
    """x: (B, N, C); scale/shift: (B, 1, C) or (1, 1, C)."""
    B, N, C = x.shape
    tn = _tile(N, 512, 8)
    per_batch = scale.shape[0] == B
    x_spec = pl.BlockSpec((1, tn, C), lambda b, j: (b, j, 0))
    ss_map = (lambda b, j: (b, 0, 0)) if per_batch else (lambda b, j: (0, 0, 0))
    ss_spec = pl.BlockSpec((1, 1, C), ss_map)
    return pl.pallas_call(
        functools.partial(_mod_ln_kernel, eps=eps),
        out_shape=jax.ShapeDtypeStruct((B, N, C), x.dtype),
        grid=(B, N // tn),
        in_specs=[x_spec, ss_spec, ss_spec],
        out_specs=x_spec,
        compiler_params=pltpu.CompilerParams(
            dimension_semantics=("parallel", "parallel")),
    )(x, scale, shift)


# ---------------------------------------------------------------------------
# Module wrapper (forward-pass port of PointTransformer)
# ---------------------------------------------------------------------------
class PointTransformerPallas:
    def __init__(self, in_channels, t_channels, n_heads, d_head, depth=1,
                 context_dim=None, out_channels=None, key=None,
                 dtype=jnp.float32):
        self.in_channels = in_channels
        self.t_channels = t_channels
        self.heads = n_heads
        self.dim_head = d_head
        self.scale = float(d_head) ** (-0.5)
        inner = n_heads * d_head
        self.inner = inner
        self.out_ch = in_channels if out_channels is None else out_channels
        ctx_dim = inner if context_dim is None else context_dim
        ffn = 4 * inner
        self.dtype = dtype
        self._hb = _heads_per_block(n_heads, d_head)
        self._blk = self._hb * d_head
        self._groups = n_heads // self._hb

        key = jax.random.PRNGKey(0) if key is None else key

        def nxt():
            nonlocal key
            key, sub = jax.random.split(key)
            return sub

        def w(din, dout):
            return (jax.random.normal(nxt(), (din, dout), jnp.float32) * 0.02
                    ).astype(dtype)

        def bvec(dout):
            return (jax.random.normal(nxt(), (1, dout), jnp.float32) * 0.02
                    ).astype(dtype)

        self.proj_in_w = w(in_channels, inner)                       # bias=False
        self.map0_w, self.map0_b = w(t_channels, inner), bvec(inner)
        self.map1_w, self.map1_b = w(inner, inner), bvec(inner)

        self.blocks = []
        for _ in range(depth):
            self.blocks.append(dict(
                # AdaLayerNorm 1/2/3 embedding linears fused into one matmul.
                norm_w=w(inner, 6 * inner), norm_b=bvec(6 * inner),
                attn1=dict(wqkv=w(inner, 3 * inner),                 # fused q|k|v
                           wo=w(inner, inner), bo=bvec(inner)),
                attn2=dict(wq=w(inner, inner),
                           wkv=w(ctx_dim, 2 * inner),                # fused k|v
                           wo=w(inner, inner), bo=bvec(inner)),
                ff=dict(w_val=w(inner, ffn), b_val=bvec(ffn),        # GEGLU value
                        w_gate=w(inner, ffn), b_gate=bvec(ffn),      # GEGLU gate
                        w_out=w(ffn, inner), b_out=bvec(inner)),
            ))

        # Final affine LayerNorm as modulated LN: LN(x)*(1+(gamma-1)) + beta.
        self.ln_scale = jnp.zeros((1, 1, inner), dtype)   # gamma = 1
        self.ln_shift = jnp.zeros((1, 1, inner), dtype)   # beta  = 0
        # zero_module(proj_out): weights start at exactly zero, bias=False.
        self.proj_out_w = jnp.zeros((inner, self.out_ch), dtype)

    # --- sub-modules -------------------------------------------------------
    def _self_attention(self, p, xn, h_res):
        B, Nq, C = xn.shape
        inner, G = self.inner, self._groups
        qkv = linear(xn.reshape(B * Nq, C), p["wqkv"]).reshape(B, Nq, 3 * inner)
        if self._blk % 128 == 0:
            # zero-copy head-group slicing straight out of the fused projection
            o = attention_core(qkv, qkv, qkv, self.heads, self.dim_head,
                               self.scale, q_goff=0, k_goff=G, v_goff=2 * G)
        else:
            q, k, v = jnp.split(qkv, 3, axis=-1)
            o = attention_core(q, k, v, self.heads, self.dim_head, self.scale)
        out = linear(o.reshape(B * Nq, inner), p["wo"], p["bo"],
                     residual=h_res.reshape(B * Nq, C))       # fused residual
        return out.reshape(B, Nq, C)

    def _cross_attention(self, p, xq, ctx, h_res):
        B, Nq, C = xq.shape
        _, Nk, Cc = ctx.shape
        inner, G = self.inner, self._groups
        q = linear(xq.reshape(B * Nq, C), p["wq"]).reshape(B, Nq, inner)
        kv = linear(ctx.reshape(B * Nk, Cc), p["wkv"]).reshape(B, Nk, 2 * inner)
        if self._blk % 128 == 0:
            o = attention_core(q, kv, kv, self.heads, self.dim_head, self.scale,
                               q_goff=0, k_goff=0, v_goff=G)
        else:
            k, v = jnp.split(kv, 2, axis=-1)
            o = attention_core(q, k, v, self.heads, self.dim_head, self.scale)
        out = linear(o.reshape(B * Nq, inner), p["wo"], p["bo"],
                     residual=h_res.reshape(B * Nq, C))       # fused residual
        return out.reshape(B, Nq, C)

    def _feedforward(self, p, xn, h_res):
        B, N, C = xn.shape
        x2 = xn.reshape(B * N, C)
        y = geglu_linear(x2, p["w_val"], p["b_val"], p["w_gate"], p["b_gate"])
        y = linear(y, p["w_out"], p["b_out"],
                   residual=h_res.reshape(B * N, C))          # fused residual
        return y.reshape(B, N, C)

    # --- forward -----------------------------------------------------------
    def features(self, x, t, cond=None):
        """Everything up to and including the final LayerNorm."""
        B, N, Cin = x.shape
        inner = self.inner

        # PositionalEmbedding(t): tiny scalar math kept in plain jnp.
        half = self.t_channels // 2
        freqs = (1.0 / 10000.0) ** (jnp.arange(half, dtype=jnp.float32) / half)
        ang = t.astype(jnp.float32)[:, None] * freqs[None, :]
        temb = jnp.concatenate([jnp.cos(ang), jnp.sin(ang)], axis=1
                               ).astype(self.dtype)                  # (B, t_ch)
        temb = linear(temb, self.map0_w, self.map0_b, activation="silu")
        temb = linear(temb, self.map1_w, self.map1_b, activation="silu")

        h = linear(x.reshape(B * N, Cin).astype(self.dtype),
                   self.proj_in_w).reshape(B, N, inner)

        for p in self.blocks:
            # All three AdaLayerNorm embedding linears in one small matmul.
            emb = linear(temb, p["norm_w"], p["norm_b"])             # (B, 6C)
            mods = [emb[:, i * inner:(i + 1) * inner].reshape(B, 1, inner)
                    for i in range(6)]

            n1 = modulated_layernorm(h, mods[0], mods[1])
            h = self._self_attention(p["attn1"], n1, h)

            n2 = modulated_layernorm(h, mods[2], mods[3])
            ctx = n2 if cond is None else cond.astype(self.dtype)
            h = self._cross_attention(p["attn2"], n2, ctx, h)

            n3 = modulated_layernorm(h, mods[4], mods[5])
            h = self._feedforward(p["ff"], n3, h)

        return modulated_layernorm(h, self.ln_scale, self.ln_shift)

    def __call__(self, x, t, cond=None):
        B, N, _ = x.shape
        h = self.features(x, t, cond)
        out = linear(h.reshape(B * N, self.inner), self.proj_out_w)
        return out.reshape(B, N, self.out_ch)


if __name__ == "__main__":
    root = jax.random.PRNGKey(0)
    kx, kt, kp = jax.random.split(root, 3)

    B, N, in_channels = 2, 16, 8
    t_channels, n_heads, d_head = 16, 4, 8          # inner = 32, ffn = 128

    x = jax.random.normal(kx, (B, N, in_channels), jnp.float32)
    t = jax.random.uniform(kt, (B,), jnp.float32, 0.0, 10.0)

    model = PointTransformerPallas(in_channels, t_channels, n_heads, d_head,
                                   depth=1, key=kp)

    out = jax.block_until_ready(model(x, t))
    assert out.shape == (B, N, in_channels), out.shape
    assert bool(jnp.all(jnp.isfinite(out)))
    # proj_out is zero_module(...)-initialized, so the final projection is 0.
    assert bool(jnp.all(out == 0.0))

    feats = jax.block_until_ready(model.features(x, t))   # exercises every kernel
    assert feats.shape == (B, N, n_heads * d_head), feats.shape
    assert bool(jnp.all(jnp.isfinite(feats)))
    assert float(jnp.std(feats)) > 0.0
    print("KERNEL_OK")
</pallas_src>

<mosaic_0001>
module attributes {stable_mosaic.version = 11 : i64} {
  func.func @_linear_kernel(%arg0: i32, %arg1: i32, %arg2: memref<2x16xf32, #tpu.memory_space<vmem>>, %arg3: memref<16x32xf32, #tpu.memory_space<vmem>>, %arg4: memref<1x32xf32, #tpu.memory_space<vmem>>, %arg5: memref<2x32xf32, #tpu.memory_space<vmem>>) attributes {dimension_semantics = [#tpu.dimension_semantics<parallel>, #tpu.dimension_semantics<parallel>], iteration_bounds = array<i64: 1, 1>, scalar_prefetch = 0 : i64, scratch_operands = 0 : i64, tpu.core_type = #tpu.core_type<tc>, window_params = [{transform_indices = @transform_0, window_bounds = array<i64: 2, 16>}, {transform_indices = @transform_1, window_bounds = array<i64: 16, 32>}, {transform_indices = @transform_2, window_bounds = array<i64: 1, 32>}, {transform_indices = @transform_3, window_bounds = array<i64: 2, 32>}]} {
    %c0 = arith.constant 0 : index
    %c0_0 = arith.constant 0 : index
    %0 = vector.load %arg2[%c0, %c0_0] : memref<2x16xf32, #tpu.memory_space<vmem>>, vector<2x16xf32>
    %c0_1 = arith.constant 0 : index
    %c0_2 = arith.constant 0 : index
    %1 = vector.load %arg3[%c0_1, %c0_2] : memref<16x32xf32, #tpu.memory_space<vmem>>, vector<16x32xf32>
    %cst = arith.constant dense<0.000000e+00> : vector<2x32xf32>
    %2 = tpu.matmul %0, %1, %cst {dimension_numbers = #tpu.dot_dimension_numbers<[1], [0], [0], [1], [0, 0, 1, 1], [], []>} : vector<2x16xf32>, vector<16x32xf32>, vector<2x32xf32> -> vector<2x32xf32>
    %c0_3 = arith.constant 0 : index
    %c0_4 = arith.constant 0 : index
    %3 = vector.load %arg4[%c0_3, %c0_4] : memref<1x32xf32, #tpu.memory_space<vmem>>, vector<1x32xf32>
    %4 = vector.broadcast %3 : vector<1x32xf32> to vector<2x32xf32>
    %5 = arith.addf %2, %4 : vector<2x32xf32>
    %cst_5 = arith.constant 0.000000e+00 : f32
    %6 = vector.broadcast %cst_5 : f32 to vector<2x32xf32>
    %7 = arith.subf %6, %5 : vector<2x32xf32>
    %8 = math.exp %7 : vector<2x32xf32>
    %cst_6 = arith.constant 1.000000e+00 : f32
    %9 = vector.broadcast %cst_6 : f32 to vector<2x32xf32>
    %10 = arith.addf %9, %8 : vector<2x32xf32>
    %cst_7 = arith.constant 1.000000e+00 : f32
    %11 = vector.broadcast %cst_7 : f32 to vector<2x32xf32>
    %12 = arith.divf %11, %10 : vector<2x32xf32>
    %13 = arith.mulf %5, %12 : vector<2x32xf32>
    %c0_8 = arith.constant 0 : index
    %c0_9 = arith.constant 0 : index
    %14 = vector.load %arg5[%c0_8, %c0_9] : memref<2x32xf32, #tpu.memory_space<vmem>>, vector<2x32xf32>
    tpu.vector_store %arg5[%c0_8, %c0_9], %13 {strides = array<i32>} : memref<2x32xf32, #tpu.memory_space<vmem>>, vector<2x32xf32>,
    return
  }
  func.func @transform_0(%arg0: i32, %arg1: i32) -> (i32, i32) {
    %c0_i32 = arith.constant 0 : i32
    %c0_i32_0 = arith.constant 0 : i32
    return %arg0, %c0_i32 : i32, i32
  }
  func.func @transform_1(%arg0: i32, %arg1: i32) -> (i32, i32) {
    %c0_i32 = arith.constant 0 : i32
    %c0_i32_0 = arith.constant 0 : i32
    return %c0_i32, %arg1 : i32, i32
  }
  func.func @transform_2(%arg0: i32, %arg1: i32) -> (i32, i32) {
    %c0_i32 = arith.constant 0 : i32
    %c0_i32_0 = arith.constant 0 : i32
    return %c0_i32, %arg1 : i32, i32
  }
  func.func @transform_3(%arg0: i32, %arg1: i32) -> (i32, i32) {
    %c0_i32 = arith.constant 0 : i32
    return %arg0, %arg1 : i32, i32
  }
}

</mosaic_0001>

<llo_original>
// kernel: tpu_custom_call.1
$region0: #{tpu_custom_call.1}
  #allocation0 [shape = 'u32[]', space=smem, size = 0x4, offset = 0x4, fixed_abs, tag = 'smem constant byte address 0x4 - core index']
  #allocation1 [shape = 'u32[144,128]{1,0:T(1,128)}', space=vmem, size = 0x12000, scoped, tag = 'internal scratch']
  %s0 = inlined_call_operand.hbm [shape: f32[2,16], index: 0, kind: input, shape index: {}]
  %s1 = inlined_call_operand.hbm [shape: f32[16,32], index: 1, kind: input, shape index: {}]
  %s2 = inlined_call_operand.vmem [shape: f32[1,32], index: 2, kind: input, shape index: {}]
  %s3 = inlined_call_operand.hbm [shape: f32[2,32], index: 3, kind: output, shape index: {}]
  %s4 = sld [smem:[#allocation0]]
  $region30: #{tpu_custom_call.1} parent=0
    _
  %s6 = ssub.s32 1, %s4
  %s7 = scalar_select 0, %s6, %s4
  $region1: #{tpu_custom_call.1} parent=0
    #allocation2 [shape = 'u8[1024]{0}', space=vmem, size = 0x400, scoped, tag = 'input window, operand 0, single buffered']
    #allocation3 [shape = 's32[1]{0}', space=sflag, size = 0x4, scoped, tag = 'scoped memory for tpu_custom_call.1']
    #allocation4 [shape = 's32[1]{0}', space=sflag, size = 0x4, scoped, tag = 'scoped memory for tpu_custom_call.1']
    #allocation5 [shape = 'u8[8192]{0}', space=vmem, size = 0x2000, scoped, tag = 'input window, operand 1, single buffered']
    #allocation6 [shape = 's32[1]{0}', space=sflag, size = 0x4, scoped, tag = 'scoped memory for tpu_custom_call.1']
    #allocation7 [shape = 'u8[1024]{0}', space=vmem, size = 0x400, scoped, tag = 'output window, operand 0, single buffered']
    %8 = vsyncpa [#allocation3], 0
    %9 = vsyncpa [#allocation6], 0
    %10 = vsyncpa [#allocation4], 0
    // Predicated region
    $region2: #{tpu_custom_call.1} parent=1 // pred_check
      _
    $region3: #{tpu_custom_call.1} parent=1 // pred_check_branch
      %12 = sbr.rel (0) target = $region5
    $region4: #{tpu_custom_call.1} parent=1 // pred_region
      %s14 = ssub.s32 32, 32
      %15 = vsyncadd [#allocation3], %s14
      %s17 = sshll.u32 [#allocation2], 4
      %s18 = int_to_ptr.vmem [resolvable:$true] %s17
      %20 = dma.hbm_to_vmem [thread:$0]  %s0, 32, %s18, [#allocation3]
    $region5: #{tpu_custom_call.1} parent=1 // pred_fallthru
      _
    // Predicated region
    $region6: #{tpu_custom_call.1} parent=1 // pred_check
      _
    $region7: #{tpu_custom_call.1} parent=1 // pred_check_branch
      %22 = sbr.rel (0) target = $region9
    $region8: #{tpu_custom_call.1} parent=1 // pred_region
      %s24 = ssub.s32 256, 256
      %25 = vsyncadd [#allocation6], %s24
      %s26 = sshll.u32 [#allocation5], 4
      %s27 = int_to_ptr.vmem [resolvable:$true] %s26
      %32 = dma.hbm_to_vmem [thread:$0]  %s1, 256, %s27, [#allocation6], 128, 128, 8
    $region9: #{tpu_custom_call.1} parent=1 // pred_fallthru
      _
    // Predicated region
    $region10: #{tpu_custom_call.1} parent=1 // pred_check
      _
    $region11: #{tpu_custom_call.1} parent=1 // pred_check_branch
      %34 = sbr.rel (0) target = $region13
    $region12: #{tpu_custom_call.1} parent=1 // pred_region
      _
    $region13: #{tpu_custom_call.1} parent=1 // pred_fallthru
      _
    // Predicated region
    $region14: #{tpu_custom_call.1} parent=1 // pred_check
      _
    $region15: #{tpu_custom_call.1} parent=1 // pred_check_branch
      %36 = sbr.rel (0) target = $region17
    $region16: #{tpu_custom_call.1} parent=1 // pred_region
      %37 = dma.done [#allocation3], 32
    $region17: #{tpu_custom_call.1} parent=1 // pred_fallthru
      _
    // Predicated region
    $region18: #{tpu_custom_call.1} parent=1 // pred_check
      _
    $region19: #{tpu_custom_call.1} parent=1 // pred_check_branch
      %39 = sbr.rel (0) target = $region21
    $region20: #{tpu_custom_call.1} parent=1 // pred_region
      %40 = dma.done [#allocation6], 256
    $region21: #{tpu_custom_call.1} parent=1 // pred_fallthru
      _
    %v41 = vld [vmem:[#allocation2] sm:$0x3]
    %v42 = vld [vmem:[#allocation5] sm:$0xff]
    %v43 = vld [vmem:[#allocation5 + $0x8] sm:$0xff]
    %v44 = vld [vmem:[%s2] sm:$0x1]
    %v46 = vlaneseq
    %v47 = vshrl.u32 %v46, 7
    %v48 = vsub.s32 0, %v47
    %v49 = vrot.slane %v44, %v48
    %vm51 = vcmask 130048
    %v53 = vsel %vm51, %v41, 0
    %55 = vmatprep.subr.mxu0 0.0
    %56 = vmatpush1.msra.mxu0 %v42
    %57 = vmatprep.subr.mxu0 0.0
    %58 = vmatpush1.msra.mxu0 %v43
    %59 = vmatprep.subr.mxu0 0.0
    %60 = vmatpush1.msra.mxu0 0.0
    %61 = vmatprep.subr.mxu0 0.0
    %62 = vmatpush1.msra.mxu0 0.0
    %63 = vmatprep.subr.mxu0 0.0
    %64 = vmatpush1.msra.mxu0 0.0
    %65 = vmatprep.subr.mxu0 0.0
    %66 = vmatpush1.msra.mxu0 0.0
    %67 = vmatprep.subr.mxu0 0.0
    %68 = vmatpush1.msra.mxu0 0.0
    %69 = vmatprep.subr.mxu0 0.0
    %70 = vmatpush1.msra.mxu0 0.0
    %71 = vmatprep.subr.mxu0 0.0
    %72 = vmatpush1.msra.mxu0 0.0
    %73 = vmatprep.subr.mxu0 0.0
    %74 = vmatpush1.msra.mxu0 0.0
    %75 = vmatprep.subr.mxu0 0.0
    %76 = vmatpush1.msra.mxu0 0.0
    %77 = vmatprep.subr.mxu0 0.0
    %78 = vmatpush1.msra.mxu0 0.0
    %79 = vmatprep.subr.mxu0 0.0
    %80 = vmatpush1.msra.mxu0 0.0
    %81 = vmatprep.subr.mxu0 0.0
    %82 = vmatpush1.msra.mxu0 0.0
    %83 = vmatprep.subr.mxu0 0.0
    %84 = vmatpush1.msra.mxu0 0.0
    %85 = vmatprep.subr.mxu0 0.0
    %86 = vmatpush1.msra.mxu0 0.0
    %87 = vmatprep.subr.mxu0 0.0
    %88 = vmatpush1.msra.mxu0 0.0
    %89 = vmatprep.subr.mxu0 0.0
    %90 = vmatpush1.msra.mxu0 0.0
    %91 = vmatprep.subr.mxu0 0.0
    %92 = vmatpush1.msra.mxu0 0.0
    %93 = vmatprep.subr.mxu0 0.0
    %94 = vmatpush1.msra.mxu0 0.0
    %95 = vmatprep.subr.mxu0 0.0
    %96 = vmatpush1.msra.mxu0 0.0
    %97 = vmatprep.subr.mxu0 0.0
    %98 = vmatpush1.msra.mxu0 0.0
    %99 = vmatprep.subr.mxu0 0.0
    %100 = vmatpush1.msra.mxu0 0.0
    %101 = vmatprep.subr.mxu0 0.0
    %102 = vmatpush1.msra.mxu0 0.0
    %103 = vmatprep.subr.mxu0 0.0
    %104 = vmatpush1.msra.mxu0 0.0
    %105 = vmatprep.subr.mxu0 0.0
    %106 = vmatpush1.msra.mxu0 0.0
    %107 = vmatprep.subr.mxu0 0.0
    %108 = vmatpush1.msra.mxu0 0.0
    %109 = vmatprep.subr.mxu0 0.0
    %110 = vmatpush1.msra.mxu0 0.0
    %111 = vmatprep.subr.mxu0 0.0
    %112 = vmatpush1.msra.mxu0 0.0
    %113 = vmatprep.subr.mxu0 0.0
    %114 = vmatpush1.msra.mxu0 0.0
    %115 = vmatprep.subr.mxu0 0.0
    %116 = vmatpush1.msra.mxu0 0.0
    %117 = vmatprep.subr.mxu0 0.0
    %118 = vmatpush1.msra.mxu0 0.0
    %119 = vmatprep.mubr.f32.mxu0 0.0
    %120 = vmatmul.mubr.f32.gmra.mrb[0].mxu0 %v53
    %v121 = vpop.f32.mrb[0].mxu0
    %v122 = vadd.f32 %v49, %v121
    %v123 = vpop.f32.mrb[0].mxu0
    %124 = vdwg.mxu0
    %v125 = vsub.f32 0.0, %v122
    %v126 = vmul.f32 %v125, 1.442695
    %v127 = vpow.pop %v126
    %v128 = vadd.f32 %v127, 1.0
    %v129 = vrcp.pop %v128
    %v130 = vmul.f32 1.0, %v129
    %v131 = vmul.f32 %v122, %v130
    %vm132 = vcmask 254976
    %133 = vst.msk [vmem:[#allocation7] sm:$0x3] %vm132, %v131
    // Predicated region
    $region22: #{tpu_custom_call.1} parent=1 // pred_check
      _
    $region23: #{tpu_custom_call.1} parent=1 // pred_check_branch
      %135 = sbr.rel (0) target = $region25
    $region24: #{tpu_custom_call.1} parent=1 // pred_region
      %s137 = ssub.s32 32, 32
      %138 = vsyncadd [#allocation4], %s137
      %s140 = sshll.u32 [#allocation7], 4
      %s141 = int_to_ptr.vmem [resolvable:$true] %s140
      %143 = dma.vmem_to_hbm [thread:$0]  %s141, 32, %s3, [#allocation4]
    $region25: #{tpu_custom_call.1} parent=1 // pred_fallthru
      _
    // Predicated region
    $region26: #{tpu_custom_call.1} parent=1 // pred_check
      _
    $region27: #{tpu_custom_call.1} parent=1 // pred_check_branch
      %145 = sbr.rel (0) target = $region29
    $region28: #{tpu_custom_call.1} parent=1 // pred_region
      %146 = dma.done [#allocation4], 32
    $region29: #{tpu_custom_call.1} parent=1 // pred_fallthru
      _
    %147 = vsyncpa [#allocation3], 1
    %148 = vsyncpa [#allocation6], 1
    %149 = vsyncpa [#allocation4], 1

</llo_original>
